<compile_context>
chip_gen: v7x
topology: tpu7x:2x2x1
jax: 0.10.0
libtpu: 0.0.40
codegen_flags: <defaults>
</compile_context>

<pallas_src>
import jax
import jax.numpy as jnp
from jax import lax
from jax.experimental import pallas as pl
from jax.experimental.pallas import tpu as pltpu

NEG_SLOPE = 0.01          # PyTorch nn.LeakyReLU default
MAX_TILE_B = 8192         # max batch rows per grid step
MIN_SPLIT_B = 512         # below this, use a single exact-size block


def _round_up(n, m):
    return ((n + m - 1) // m) * m


def _choose_tile_b(B):
    if B < MIN_SPLIT_B:
        return B                                   # one block == full array (always legal)
    n_steps = max(2, pl.cdiv(B, MAX_TILE_B))       # >=2 steps -> both v7x TCs busy
    return min(MAX_TILE_B, _round_up(pl.cdiv(B, n_steps), 128))


def _pick_compute_dtype():
    """bf16 epilogue on chips whose VPU has a bf16 path (v6e/v7x); f32 otherwise."""
    try:
        kind = jax.devices()[0].device_kind.lower()
    except Exception:
        return jnp.float32
    if ("v6" in kind) or ("v7" in kind) or ("7x" in kind):
        return jnp.bfloat16
    return jnp.float32


def _leaky(y):
    # max(y, 0.01*y) == LeakyReLU(y) for slope in (0, 1): mul + max on the VPU.
    return jnp.maximum(y, NEG_SLOPE * y)


def dqn_kernel(x_ref, w1_ref, b1_ref, w2_ref, b2_ref, w3t_ref, b3_ref, o_ref):
    # x_ref: (TB, S) batch-major straight from HBM.  Intermediates are kept
    # feature-major (features on sublanes, batch on the 128-wide lane axis) so
    # the big (64, TB)/(32, TB) slabs are lane-dense.  MXU accumulates in f32;
    # the epilogue runs in the (pre-cast) dtype of the resident biases.
    cdt = b1_ref.dtype

    # Layer 1: h1[f, b] = sum_s W1[f, s] * x[b, s]   (contract both minor dims)
    h1 = lax.dot_general(w1_ref[...], x_ref[...],
                         (((1,), (1,)), ((), ())),
                         preferred_element_type=jnp.float32)           # (64, TB) f32
    h1 = _leaky(h1.astype(cdt) + b1_ref[...])                          # (64, TB) cdt

    # Layer 2: standard contraction, stays feature-major.
    h2 = jnp.dot(w2_ref[...], h1, preferred_element_type=jnp.float32)  # (32, TB) f32
    # Dropout (eval mode) -> identity.
    h2 = _leaky(h2.astype(cdt) + b2_ref[...])                          # (32, TB) cdt

    # Layer 3: contract the feature axis of h2 (dim 0) against W3^T (32, O) so
    # the result lands batch-major (TB, O) and stores straight to the output.
    out = lax.dot_general(h2, w3t_ref[...],
                          (((0,), (0,)), ((), ())),
                          preferred_element_type=jnp.float32)          # (TB, O) f32
    o_ref[...] = (out + b3_ref[...]).astype(o_ref.dtype)


def dqn_epszero_forward(x, params, compute_dtype=None):
    """x: any shape whose trailing elements flatten to `states` per row
    (mirrors x.view(-1, states)).  Returns (B, outputs) float32."""
    w1, b1, w2, b2, w3, b3 = params               # w: (out, in), b: (out, 1)
    states = w1.shape[1]
    outputs = w3.shape[0]

    x2d = x.reshape(-1, states)
    B = x2d.shape[0]
    cdt = _pick_compute_dtype() if compute_dtype is None else compute_dtype

    # One-time (KB-scale) parameter prep -- no per-step casts inside the kernel.
    w1c = w1.astype(x2d.dtype)                    # layer-1 operands match x's dtype
    b1c = b1.astype(cdt)                          # (64, 1)  lane-broadcast column
    w2c = w2.astype(cdt)                          # (32, 64)
    b2c = b2.astype(cdt)                          # (32, 1)
    w3t = w3.T.astype(cdt)                        # (32, O)  pre-transposed for layer 3
    b3r = b3.reshape(1, outputs).astype(jnp.float32)   # (1, O) sublane-broadcast row

    tile_b = _choose_tile_b(B)
    grid = (pl.cdiv(B, tile_b),)                  # tail block handled by Pallas padding
    resident = lambda i: (0, 0)                   # params stay resident across steps

    return pl.pallas_call(
        dqn_kernel,
        out_shape=jax.ShapeDtypeStruct((B, outputs), jnp.float32),
        grid=grid,
        in_specs=[
            pl.BlockSpec((tile_b, states), lambda i: (i, 0)),
            pl.BlockSpec(w1c.shape, resident),
            pl.BlockSpec(b1c.shape, resident),
            pl.BlockSpec(w2c.shape, resident),
            pl.BlockSpec(b2c.shape, resident),
            pl.BlockSpec(w3t.shape, resident),
            pl.BlockSpec(b3r.shape, resident),
        ],
        out_specs=pl.BlockSpec((tile_b, outputs), lambda i: (i, 0)),
        compiler_params=pltpu.CompilerParams(
            dimension_semantics=("parallel",),
            vmem_limit_bytes=32 * 1024 * 1024),
    )(x2d, w1c, b1c, w2c, b2c, w3t, b3r)


def init_params(key, states, outputs):
    """PyTorch nn.Linear default init: U(-1/sqrt(fan_in), 1/sqrt(fan_in)).
    Weights stored PyTorch-style (out, in); biases as (out, 1) columns."""
    def linear(key, fan_in, fan_out):
        kw, kb = jax.random.split(key)
        bound = 1.0 / float(fan_in) ** 0.5
        w = jax.random.uniform(kw, (fan_out, fan_in), jnp.float32, -bound, bound)
        b = jax.random.uniform(kb, (fan_out, 1), jnp.float32, -bound, bound)
        return w, b

    k1, k2, k3 = jax.random.split(key, 3)
    w1, b1 = linear(k1, states, 64)
    w2, b2 = linear(k2, 64, 32)
    w3, b3 = linear(k3, 32, outputs)
    return (w1, b1, w2, b2, w3, b3)


def reference_forward(x, params):
    """Full-f32 reference of the module (dropout in eval mode)."""
    w1, b1, w2, b2, w3, b3 = params
    states = w1.shape[1]
    hp = jax.lax.Precision.HIGHEST

    def leaky(y):
        return jnp.maximum(y, NEG_SLOPE * y)

    h = x.reshape(-1, states).astype(jnp.float32)
    h = leaky(jnp.dot(h, w1.T, precision=hp) + b1.T)
    h = leaky(jnp.dot(h, w2.T, precision=hp) + b2.T)   # dropout (eval) = identity
    return jnp.dot(h, w3.T, precision=hp) + b3.T


if __name__ == "__main__":
    states, outputs, batch = 16, 4, 8
    key = jax.random.PRNGKey(0)
    kx, kp = jax.random.split(key)

    # Input shaped (2, 4, 16) exercises the x.view(-1, states) flatten -> (8, 16)
    x = jax.random.normal(kx, (2, 4, states), dtype=jnp.float32)
    params = init_params(kp, states, outputs)

    out = jax.block_until_ready(dqn_epszero_forward(x, params))
    assert out.shape == (batch, outputs)

    ref = reference_forward(x, params)
    # Tolerance absorbs the bf16 epilogue / MXU operand rounding on any TPU gen.
    assert jnp.allclose(out, ref, atol=5e-2, rtol=5e-2), (
        f"mismatch vs f32 reference: max abs err {jnp.max(jnp.abs(out - ref))}")

    print("KERNEL_OK")
</pallas_src>

<mosaic_0001>
module attributes {stable_mosaic.version = 11 : i64} {
  func.func @dqn_kernel(%arg0: i32, %arg1: memref<8x16xf32, #tpu.memory_space<vmem>>, %arg2: memref<64x16xf32, #tpu.memory_space<vmem>>, %arg3: memref<64x1xf32, #tpu.memory_space<vmem>>, %arg4: memref<32x64xf32, #tpu.memory_space<vmem>>, %arg5: memref<32x1xf32, #tpu.memory_space<vmem>>, %arg6: memref<32x4xf32, #tpu.memory_space<vmem>>, %arg7: memref<1x4xf32, #tpu.memory_space<vmem>>, %arg8: memref<8x4xf32, #tpu.memory_space<vmem>>) attributes {dimension_semantics = [#tpu.dimension_semantics<parallel>], iteration_bounds = array<i64: 1>, scalar_prefetch = 0 : i64, scratch_operands = 0 : i64, tpu.core_type = #tpu.core_type<tc>, window_params = [{transform_indices = @transform_0, window_bounds = array<i64: 8, 16>}, {pipeline_mode = #tpu.pipeline_mode<synchronous>, transform_indices = @transform_1, window_bounds = array<i64: 64, 16>}, {pipeline_mode = #tpu.pipeline_mode<synchronous>, transform_indices = @transform_2, window_bounds = array<i64: 64, 1>}, {pipeline_mode = #tpu.pipeline_mode<synchronous>, transform_indices = @transform_3, window_bounds = array<i64: 32, 64>}, {pipeline_mode = #tpu.pipeline_mode<synchronous>, transform_indices = @transform_4, window_bounds = array<i64: 32, 1>}, {pipeline_mode = #tpu.pipeline_mode<synchronous>, transform_indices = @transform_5, window_bounds = array<i64: 32, 4>}, {pipeline_mode = #tpu.pipeline_mode<synchronous>, transform_indices = @transform_6, window_bounds = array<i64: 1, 4>}, {transform_indices = @transform_7, window_bounds = array<i64: 8, 4>}]} {
    %c0 = arith.constant 0 : index
    %c0_0 = arith.constant 0 : index
    %0 = vector.load %arg2[%c0, %c0_0] : memref<64x16xf32, #tpu.memory_space<vmem>>, vector<64x16xf32>
    %c0_1 = arith.constant 0 : index
    %c0_2 = arith.constant 0 : index
    %1 = vector.load %arg1[%c0_1, %c0_2] : memref<8x16xf32, #tpu.memory_space<vmem>>, vector<8x16xf32>
    %cst = arith.constant dense<0.000000e+00> : vector<64x8xf32>
    %2 = tpu.matmul %0, %1, %cst {dimension_numbers = #tpu.dot_dimension_numbers<[1], [1], [0], [0], [0, 0, 1, 0], [], []>} : vector<64x16xf32>, vector<8x16xf32>, vector<64x8xf32> -> vector<64x8xf32>
    %c0_3 = arith.constant 0 : index
    %c0_4 = arith.constant 0 : index
    %3 = vector.load %arg3[%c0_3, %c0_4] : memref<64x1xf32, #tpu.memory_space<vmem>>, vector<64x1xf32>
    %4 = vector.broadcast %3 : vector<64x1xf32> to vector<64x8xf32>
    %5 = arith.addf %2, %4 : vector<64x8xf32>
    %cst_5 = arith.constant 0.00999999977 : f32
    %6 = vector.broadcast %cst_5 : f32 to vector<64x8xf32>
    %7 = arith.mulf %6, %5 : vector<64x8xf32>
    %8 = arith.maximumf %5, %7 : vector<64x8xf32>
    %c0_6 = arith.constant 0 : index
    %c0_7 = arith.constant 0 : index
    %9 = vector.load %arg4[%c0_6, %c0_7] : memref<32x64xf32, #tpu.memory_space<vmem>>, vector<32x64xf32>
    %cst_8 = arith.constant dense<0.000000e+00> : vector<32x8xf32>
    %10 = tpu.matmul %9, %8, %cst_8 {dimension_numbers = #tpu.dot_dimension_numbers<[1], [0], [0], [1], [0, 0, 1, 1], [], []>} : vector<32x64xf32>, vector<64x8xf32>, vector<32x8xf32> -> vector<32x8xf32>
    %c0_9 = arith.constant 0 : index
    %c0_10 = arith.constant 0 : index
    %11 = vector.load %arg5[%c0_9, %c0_10] : memref<32x1xf32, #tpu.memory_space<vmem>>, vector<32x1xf32>
    %12 = vector.broadcast %11 : vector<32x1xf32> to vector<32x8xf32>
    %13 = arith.addf %10, %12 : vector<32x8xf32>
    %cst_11 = arith.constant 0.00999999977 : f32
    %14 = vector.broadcast %cst_11 : f32 to vector<32x8xf32>
    %15 = arith.mulf %14, %13 : vector<32x8xf32>
    %16 = arith.maximumf %13, %15 : vector<32x8xf32>
    %c0_12 = arith.constant 0 : index
    %c0_13 = arith.constant 0 : index
    %17 = vector.load %arg6[%c0_12, %c0_13] : memref<32x4xf32, #tpu.memory_space<vmem>>, vector<32x4xf32>
    %cst_14 = arith.constant dense<0.000000e+00> : vector<8x4xf32>
    %18 = tpu.matmul %16, %17, %cst_14 {dimension_numbers = #tpu.dot_dimension_numbers<[0], [0], [1], [1], [0, 1, 1, 1], [], []>} : vector<32x8xf32>, vector<32x4xf32>, vector<8x4xf32> -> vector<8x4xf32>
    %c0_15 = arith.constant 0 : index
    %c0_16 = arith.constant 0 : index
    %19 = vector.load %arg7[%c0_15, %c0_16] : memref<1x4xf32, #tpu.memory_space<vmem>>, vector<1x4xf32>
    %20 = vector.broadcast %19 : vector<1x4xf32> to vector<8x4xf32>
    %21 = arith.addf %18, %20 : vector<8x4xf32>
    %c0_17 = arith.constant 0 : index
    %c0_18 = arith.constant 0 : index
    %22 = vector.load %arg8[%c0_17, %c0_18] : memref<8x4xf32, #tpu.memory_space<vmem>>, vector<8x4xf32>
    tpu.vector_store %arg8[%c0_17, %c0_18], %21 {strides = array<i32>} : memref<8x4xf32, #tpu.memory_space<vmem>>, vector<8x4xf32>,
    return
  }
  func.func @transform_0(%arg0: i32) -> (i32, i32) {
    %c0_i32 = arith.constant 0 : i32
    %c0_i32_0 = arith.constant 0 : i32
    return %arg0, %c0_i32 : i32, i32
  }
  func.func @transform_1(%arg0: i32) -> (i32, i32) {
    %c0_i32 = arith.constant 0 : i32
    %c0_i32_0 = arith.constant 0 : i32
    %c0_i32_1 = arith.constant 0 : i32
    return %c0_i32, %c0_i32_0 : i32, i32
  }
  func.func @transform_2(%arg0: i32) -> (i32, i32) {
    %c0_i32 = arith.constant 0 : i32
    %c0_i32_0 = arith.constant 0 : i32
    %c0_i32_1 = arith.constant 0 : i32
    return %c0_i32, %c0_i32_0 : i32, i32
  }
  func.func @transform_3(%arg0: i32) -> (i32, i32) {
    %c0_i32 = arith.constant 0 : i32
    %c0_i32_0 = arith.constant 0 : i32
    %c0_i32_1 = arith.constant 0 : i32
    return %c0_i32, %c0_i32_0 : i32, i32
  }
  func.func @transform_4(%arg0: i32) -> (i32, i32) {
    %c0_i32 = arith.constant 0 : i32
    %c0_i32_0 = arith.constant 0 : i32
    %c0_i32_1 = arith.constant 0 : i32
    return %c0_i32, %c0_i32_0 : i32, i32
  }
  func.func @transform_5(%arg0: i32) -> (i32, i32) {
    %c0_i32 = arith.constant 0 : i32
    %c0_i32_0 = arith.constant 0 : i32
    %c0_i32_1 = arith.constant 0 : i32
    return %c0_i32, %c0_i32_0 : i32, i32
  }
  func.func @transform_6(%arg0: i32) -> (i32, i32) {
    %c0_i32 = arith.constant 0 : i32
    %c0_i32_0 = arith.constant 0 : i32
    %c0_i32_1 = arith.constant 0 : i32
    return %c0_i32, %c0_i32_0 : i32, i32
  }
  func.func @transform_7(%arg0: i32) -> (i32, i32) {
    %c0_i32 = arith.constant 0 : i32
    %c0_i32_0 = arith.constant 0 : i32
    return %arg0, %c0_i32 : i32, i32
  }
}

</mosaic_0001>

<llo_original>
// kernel: tpu_custom_call.1
$region0: #{tpu_custom_call.1}
  #allocation0 [shape = 'u32[]', space=smem, size = 0x4, offset = 0x4, fixed_abs, tag = 'smem constant byte address 0x4 - core index']
  #allocation1 [shape = 'u32[144,128]{1,0:T(1,128)}', space=vmem, size = 0x12000, scoped, tag = 'internal scratch']
  %s0 = inlined_call_operand.vmem [shape: f32[8,16], index: 0, kind: input, shape index: {}]
  %s1 = inlined_call_operand.vmem [shape: f32[64,16], index: 1, kind: input, shape index: {}]
  %s2 = inlined_call_operand.vmem [shape: f32[64,1], index: 2, kind: input, shape index: {}]
  %s3 = inlined_call_operand.vmem [shape: f32[32,64], index: 3, kind: input, shape index: {}]
  %s4 = inlined_call_operand.vmem [shape: f32[32,1], index: 4, kind: input, shape index: {}]
  %s5 = inlined_call_operand.vmem [shape: f32[32,4], index: 5, kind: input, shape index: {}]
  %s6 = inlined_call_operand.vmem [shape: f32[1,4], index: 6, kind: input, shape index: {}]
  %s7 = inlined_call_operand.vmem [shape: f32[8,4], index: 7, kind: output, shape index: {}]
  %s8 = sld [smem:[#allocation0]]
  $region38: #{tpu_custom_call.1} parent=0
    _
  %s10 = ssub.s32 1, %s8
  %s11 = scalar_select 0, %s10, %s8
  // Predicated region
  $region2: #{tpu_custom_call.1} parent=0 // pred_check
    _
  $region3: #{tpu_custom_call.1} parent=0 // pred_check_branch
    %13 = sbr.rel (0) target = $region5
  $region4: #{tpu_custom_call.1} parent=0 // pred_region
    _
  $region5: #{tpu_custom_call.1} parent=0 // pred_fallthru
    _
  // Predicated region
  $region6: #{tpu_custom_call.1} parent=0 // pred_check
    _
  $region7: #{tpu_custom_call.1} parent=0 // pred_check_branch
    %15 = sbr.rel (0) target = $region9
  $region8: #{tpu_custom_call.1} parent=0 // pred_region
    _
  $region9: #{tpu_custom_call.1} parent=0 // pred_fallthru
    _
  // Predicated region
  $region10: #{tpu_custom_call.1} parent=0 // pred_check
    _
  $region11: #{tpu_custom_call.1} parent=0 // pred_check_branch
    %17 = sbr.rel (0) target = $region13
  $region12: #{tpu_custom_call.1} parent=0 // pred_region
    _
  $region13: #{tpu_custom_call.1} parent=0 // pred_fallthru
    _
  // Predicated region
  $region14: #{tpu_custom_call.1} parent=0 // pred_check
    _
  $region15: #{tpu_custom_call.1} parent=0 // pred_check_branch
    %19 = sbr.rel (0) target = $region17
  $region16: #{tpu_custom_call.1} parent=0 // pred_region
    _
  $region17: #{tpu_custom_call.1} parent=0 // pred_fallthru
    _
  // Predicated region
  $region18: #{tpu_custom_call.1} parent=0 // pred_check
    _
  $region19: #{tpu_custom_call.1} parent=0 // pred_check_branch
    %21 = sbr.rel (0) target = $region21
  $region20: #{tpu_custom_call.1} parent=0 // pred_region
    _
  $region21: #{tpu_custom_call.1} parent=0 // pred_fallthru
    _
  // Predicated region
  $region22: #{tpu_custom_call.1} parent=0 // pred_check
    _
  $region23: #{tpu_custom_call.1} parent=0 // pred_check_branch
    %23 = sbr.rel (0) target = $region25
  $region24: #{tpu_custom_call.1} parent=0 // pred_region
    _
  $region25: #{tpu_custom_call.1} parent=0 // pred_fallthru
    _
  // Predicated region
  $region26: #{tpu_custom_call.1} parent=0 // pred_check
    _
  $region27: #{tpu_custom_call.1} parent=0 // pred_check_branch
    %25 = sbr.rel (0) target = $region29
  $region28: #{tpu_custom_call.1} parent=0 // pred_region
    _
  $region29: #{tpu_custom_call.1} parent=0 // pred_fallthru
    _
  %v26 = vld [vmem:[%s1] sm:$0xff]
  %v27 = vld [vmem:[%s1 + $0x8] sm:$0xff]
  %v28 = vld [vmem:[%s1 + $0x10] sm:$0xff]
  %v29 = vld [vmem:[%s1 + $0x18] sm:$0xff]
  %v30 = vld [vmem:[%s1 + $0x20] sm:$0xff]
  %v31 = vld [vmem:[%s1 + $0x28] sm:$0xff]
  %v32 = vld [vmem:[%s1 + $0x30] sm:$0xff]
  %v33 = vld [vmem:[%s1 + $0x38] sm:$0xff]
  %v34 = vld [vmem:[%s0] sm:$0xff]
  %v35 = vld [vmem:[%s2] sm:$0xff]
  %v36 = vld [vmem:[%s2 + $0x8] sm:$0xff]
  %v37 = vld [vmem:[%s2 + $0x10] sm:$0xff]
  %v38 = vld [vmem:[%s2 + $0x18] sm:$0xff]
  %v39 = vld [vmem:[%s2 + $0x20] sm:$0xff]
  %v40 = vld [vmem:[%s2 + $0x28] sm:$0xff]
  %v41 = vld [vmem:[%s2 + $0x30] sm:$0xff]
  %v42 = vld [vmem:[%s2 + $0x38] sm:$0xff]
  %44 = vset.pattern.permute.xlu0 0
  %45 = vperm.xlu0 %44, %v35
  %v46 = vpop.permute.xlu0 %45
  %49 = vset.pattern.permute.xlu0 0
  %50 = vperm.xlu0 %49, %v36
  %v51 = vpop.permute.xlu0 %50
  %54 = vset.pattern.permute.xlu0 0
  %55 = vperm.xlu0 %54, %v37
  %v56 = vpop.permute.xlu0 %55
  %59 = vset.pattern.permute.xlu0 0
  %60 = vperm.xlu0 %59, %v38
  %v61 = vpop.permute.xlu0 %60
  %64 = vset.pattern.permute.xlu0 0
  %65 = vperm.xlu0 %64, %v39
  %v66 = vpop.permute.xlu0 %65
  %69 = vset.pattern.permute.xlu0 0
  %70 = vperm.xlu0 %69, %v40
  %v71 = vpop.permute.xlu0 %70
  %74 = vset.pattern.permute.xlu0 0
  %75 = vperm.xlu0 %74, %v41
  %v76 = vpop.permute.xlu0 %75
  %79 = vset.pattern.permute.xlu0 0
  %80 = vperm.xlu0 %79, %v42
  %v81 = vpop.permute.xlu0 %80
  %vm83 = vcmask 130048
  %v85 = vsel %vm83, %v26, 0
  %v88 = vsel %vm83, %v27, 0
  %v91 = vsel %vm83, %v28, 0
  %v94 = vsel %vm83, %v29, 0
  %v97 = vsel %vm83, %v30, 0
  %v100 = vsel %vm83, %v31, 0
  %v103 = vsel %vm83, %v32, 0
  %v106 = vsel %vm83, %v33, 0
  %v109 = vsel %vm83, %v34, 0
  %111 = vmatprep.subr.mxu0 0.0
  %112 = vmatpush1.xpose.msra.mxu0 %v109
  %113 = vmatprep.subr.mxu0 0.0
  %114 = vmatpush1.xpose.msra.mxu0 0.0
  %115 = vmatprep.subr.mxu0 0.0
  %116 = vmatpush1.xpose.msra.mxu0 0.0
  %117 = vmatprep.subr.mxu0 0.0
  %118 = vmatpush1.xpose.msra.mxu0 0.0
  %119 = vmatprep.subr.mxu0 0.0
  %120 = vmatpush1.xpose.msra.mxu0 0.0
  %121 = vmatprep.subr.mxu0 0.0
  %122 = vmatpush1.xpose.msra.mxu0 0.0
  %123 = vmatprep.subr.mxu0 0.0
  %124 = vmatpush1.xpose.msra.mxu0 0.0
  %125 = vmatprep.subr.mxu0 0.0
  %126 = vmatpush1.xpose.msra.mxu0 0.0
  %127 = vmatprep.subr.mxu0 0.0
  %128 = vmatpush1.xpose.msra.mxu0 0.0
  %129 = vmatprep.subr.mxu0 0.0
  %130 = vmatpush1.xpose.msra.mxu0 0.0
  %131 = vmatprep.subr.mxu0 0.0
  %132 = vmatpush1.xpose.msra.mxu0 0.0
  %133 = vmatprep.subr.mxu0 0.0
  %134 = vmatpush1.xpose.msra.mxu0 0.0
  %135 = vmatprep.subr.mxu0 0.0
  %136 = vmatpush1.xpose.msra.mxu0 0.0
  %137 = vmatprep.subr.mxu0 0.0
  %138 = vmatpush1.xpose.msra.mxu0 0.0
  %139 = vmatprep.subr.mxu0 0.0
  %140 = vmatpush1.xpose.msra.mxu0 0.0
  %141 = vmatprep.subr.mxu0 0.0
  %142 = vmatpush1.xpose.msra.mxu0 0.0
  %143 = vmatprep.subr.mxu0 0.0
  %144 = vmatpush1.xpose.msra.mxu0 0.0
  %145 = vmatprep.subr.mxu0 0.0
  %146 = vmatpush1.xpose.msra.mxu0 0.0
  %147 = vmatprep.subr.mxu0 0.0
  %148 = vmatpush1.xpose.msra.mxu0 0.0
  %149 = vmatprep.subr.mxu0 0.0
  %150 = vmatpush1.xpose.msra.mxu0 0.0
  %151 = vmatprep.subr.mxu0 0.0
  %152 = vmatpush1.xpose.msra.mxu0 0.0
  %153 = vmatprep.subr.mxu0 0.0
  %154 = vmatpush1.xpose.msra.mxu0 0.0
  %155 = vmatprep.subr.mxu0 0.0
  %156 = vmatpush1.xpose.msra.mxu0 0.0
  %157 = vmatprep.subr.mxu0 0.0
  %158 = vmatpush1.xpose.msra.mxu0 0.0
  %159 = vmatprep.subr.mxu0 0.0
  %160 = vmatpush1.xpose.msra.mxu0 0.0
  %161 = vmatprep.subr.mxu0 0.0
  %162 = vmatpush1.xpose.msra.mxu0 0.0
  %163 = vmatprep.subr.mxu0 0.0
  %164 = vmatpush1.xpose.msra.mxu0 0.0
  %165 = vmatprep.subr.mxu0 0.0
  %166 = vmatpush1.xpose.msra.mxu0 0.0
  %167 = vmatprep.subr.mxu0 0.0
  %168 = vmatpush1.xpose.msra.mxu0 0.0
  %169 = vmatprep.subr.mxu0 0.0
  %170 = vmatpush1.xpose.msra.mxu0 0.0
  %171 = vmatprep.subr.mxu0 0.0
  %172 = vmatpush1.xpose.msra.mxu0 0.0
  %173 = vmatprep.subr.mxu0 0.0
  %174 = vmatpush1.xpose.msra.mxu0 0.0
  %175 = vmatprep.mubr.f32.mxu0 0.0
  %176 = vmatmul.mubr.f32.gmra.mrb[0].mxu0 %v85
  %v177 = vpop.f32.mrb[0].mxu0
  %v178 = vadd.f32 %v46, %v177
  %v179 = vpop.f32.mrb[0].mxu0
  %180 = vmatprep.mubr.f32.mxu0 0.0
  %181 = vmatmul.mubr.f32.gmra.mrb[0].mxu0 %v88
  %v182 = vpop.f32.mrb[0].mxu0
  %v183 = vadd.f32 %v51, %v182
  %v184 = vpop.f32.mrb[0].mxu0
  %185 = vmatprep.mubr.f32.mxu0 0.0
  %186 = vmatmul.mubr.f32.gmra.mrb[0].mxu0 %v91
  %v187 = vpop.f32.mrb[0].mxu0
  %v188 = vadd.f32 %v56, %v187
  %v189 = vpop.f32.mrb[0].mxu0
  %190 = vmatprep.mubr.f32.mxu0 0.0
  %191 = vmatmul.mubr.f32.gmra.mrb[0].mxu0 %v94
  %v192 = vpop.f32.mrb[0].mxu0
  %v193 = vadd.f32 %v61, %v192
  %v194 = vpop.f32.mrb[0].mxu0
  %195 = vmatprep.mubr.f32.mxu0 0.0
  %196 = vmatmul.mubr.f32.gmra.mrb[0].mxu0 %v97
  %v197 = vpop.f32.mrb[0].mxu0
  %v198 = vadd.f32 %v66, %v197
  %v199 = vpop.f32.mrb[0].mxu0
  %200 = vmatprep.mubr.f32.mxu0 0.0
  %201 = vmatmul.mubr.f32.gmra.mrb[0].mxu0 %v100
  %v202 = vpop.f32.mrb[0].mxu0
  %v203 = vadd.f32 %v71, %v202
  %v204 = vpop.f32.mrb[0].mxu0
  %205 = vmatprep.mubr.f32.mxu0 0.0
  %206 = vmatmul.mubr.f32.gmra.mrb[0].mxu0 %v103
  %v207 = vpop.f32.mrb[0].mxu0
  %v208 = vadd.f32 %v76, %v207
  %v209 = vpop.f32.mrb[0].mxu0
  %210 = vmatprep.mubr.f32.mxu0 0.0
  %211 = vmatmul.mubr.f32.gmra.mrb[0].mxu0 %v106
  %v212 = vpop.f32.mrb[0].mxu0
  %v213 = vadd.f32 %v81, %v212
  %v214 = vpop.f32.mrb[0].mxu0
  %215 = vdwg.mxu0
  %v216 = vmul.f32 %v178, 0.01
  %v217 = vmul.f32 %v183, 0.01
  %v218 = vmul.f32 %v188, 0.01
  %v219 = vmul.f32 %v193, 0.01
  %v220 = vmul.f32 %v198, 0.01
  %v221 = vmul.f32 %v203, 0.01
  %v222 = vmul.f32 %v208, 0.01
  %v223 = vmul.f32 %v213, 0.01
  %v224 = vmax.f32 %v178, %v216
  %v225 = vmax.f32 %v183, %v217
  %v226 = vmax.f32 %v188, %v218
  %v227 = vmax.f32 %v193, %v219
  %v228 = vmax.f32 %v198, %v220
  %v229 = vmax.f32 %v203, %v221
  %v230 = vmax.f32 %v208, %v222
  %v231 = vmax.f32 %v213, %v223
  %v232 = vld [vmem:[%s3] sm:$0xff]
  %v233 = vld [vmem:[%s3 + $0x8] sm:$0xff]
  %v234 = vld [vmem:[%s3 + $0x10] sm:$0xff]
  %v235 = vld [vmem:[%s3 + $0x18] sm:$0xff]
  %v236 = vld [vmem:[%s4] sm:$0xff]
  %v237 = vld [vmem:[%s4 + $0x8] sm:$0xff]
  %v238 = vld [vmem:[%s4 + $0x10] sm:$0xff]
  %v239 = vld [vmem:[%s4 + $0x18] sm:$0xff]
  %241 = vset.pattern.permute.xlu0 0
  %242 = vperm.xlu0 %241, %v236
  %v243 = vpop.permute.xlu0 %242
  %246 = vset.pattern.permute.xlu0 0
  %247 = vperm.xlu0 %246, %v237
  %v248 = vpop.permute.xlu0 %247
  %251 = vset.pattern.permute.xlu0 0
  %252 = vperm.xlu0 %251, %v238
  %v253 = vpop.permute.xlu0 %252
  %256 = vset.pattern.permute.xlu0 0
  %257 = vperm.xlu0 %256, %v239
  %v258 = vpop.permute.xlu0 %257
  %vm260 = vcmask 523264
  %v262 = vsel %vm260, %v232, 0
  %v265 = vsel %vm260, %v233, 0
  %v268 = vsel %vm260, %v234, 0
  %v271 = vsel %vm260, %v235, 0
  %273 = vmatprep.subr.mxu0 0.0
  %274 = vmatpush1.msra.mxu0 %v224
  %275 = vmatprep.subr.mxu0 0.0
  %276 = vmatpush1.msra.mxu0 %v225
  %277 = vmatprep.subr.mxu0 0.0
  %278 = vmatpush1.msra.mxu0 %v226
  %279 = vmatprep.subr.mxu0 0.0
  %280 = vmatpush1.msra.mxu0 %v227
  %281 = vmatprep.subr.mxu0 0.0
  %282 = vmatpush1.msra.mxu0 %v228
  %283 = vmatprep.subr.mxu0 0.0
  %284 = vmatpush1.msra.mxu0 %v229
  %285 = vmatprep.subr.mxu0 0.0
  %286 = vmatpush1.msra.mxu0 %v230
  %287 = vmatprep.subr.mxu0 0.0
  %288 = vmatpush1.msra.mxu0 %v231
  %289 = vmatprep.subr.mxu0 0.0
  %290 = vmatpush1.msra.mxu0 0.0
  %291 = vmatprep.subr.mxu0 0.0
  %292 = vmatpush1.msra.mxu0 0.0
  %293 = vmatprep.subr.mxu0 0.0
  %294 = vmatpush1.msra.mxu0 0.0
  %295 = vmatprep.subr.mxu0 0.0
  %296 = vmatpush1.msra.mxu0 0.0
  %297 = vmatprep.subr.mxu0 0.0
  %298 = vmatpush1.msra.mxu0 0.0
  %299 = vmatprep.subr.mxu0 0.0
  %300 = vmatpush1.msra.mxu0 0.0
  %301 = vmatprep.subr.mxu0 0.0
  %302 = vmatpush1.msra.mxu0 0.0
  %303 = vmatprep.subr.mxu0 0.0
  %304 = vmatpush1.msra.mxu0 0.0
  %305 = vmatprep.subr.mxu0 0.0
  %306 = vmatpush1.msra.mxu0 0.0
  %307 = vmatprep.subr.mxu0 0.0
  %308 = vmatpush1.msra.mxu0 0.0
  %309 = vmatprep.subr.mxu0 0.0
  %310 = vmatpush1.msra.mxu0 0.0
  %311 = vmatprep.subr.mxu0 0.0
  %312 = vmatpush1.msra.mxu0 0.0
  %313 = vmatprep.subr.mxu0 0.0
  %314 = vmatpush1.msra.mxu0 0.0
  %315 = vmatprep.subr.mxu0 0.0
  %316 = vmatpush1.msra.mxu0 0.0
  %317 = vmatprep.subr.mxu0 0.0
  %318 = vmatpush1.msra.mxu0 0.0
  %319 = vmatprep.subr.mxu0 0.0
  %320 = vmatpush1.msra.mxu0 0.0
  %321 = vmatprep.subr.mxu0 0.0
  %322 = vmatpush1.msra.mxu0 0.0
  %323 = vmatprep.subr.mxu0 0.0
  %324 = vmatpush1.msra.mxu0 0.0
  %325 = vmatprep.subr.mxu0 0.0
  %326 = vmatpush1.msra.mxu0 0.0
  %327 = vmatprep.subr.mxu0 0.0
  %328 = vmatpush1.msra.mxu0 0.0
  %329 = vmatprep.subr.mxu0 0.0
  %330 = vmatpush1.msra.mxu0 0.0
  %331 = vmatprep.subr.mxu0 0.0
  %332 = vmatpush1.msra.mxu0 0.0
  %333 = vmatprep.subr.mxu0 0.0
  %334 = vmatpush1.msra.mxu0 0.0
  %335 = vmatprep.subr.mxu0 0.0
  %336 = vmatpush1.msra.mxu0 0.0
  %337 = vmatprep.mubr.f32.mxu0 0.0
  %338 = vmatmul.mubr.f32.gmra.mrb[0].mxu0 %v262
  %v339 = vpop.f32.mrb[0].mxu0
  %v340 = vadd.f32 %v243, %v339
  %v341 = vpop.f32.mrb[0].mxu0
  %342 = vmatprep.mubr.f32.mxu0 0.0
  %343 = vmatmul.mubr.f32.gmra.mrb[0].mxu0 %v265
  %v344 = vpop.f32.mrb[0].mxu0
  %v345 = vadd.f32 %v248, %v344
  %v346 = vpop.f32.mrb[0].mxu0
  %347 = vmatprep.mubr.f32.mxu0 0.0
  %348 = vmatmul.mubr.f32.gmra.mrb[0].mxu0 %v268
  %v349 = vpop.f32.mrb[0].mxu0
  %v350 = vadd.f32 %v253, %v349
  %v351 = vpop.f32.mrb[0].mxu0
  %352 = vmatprep.mubr.f32.mxu0 0.0
  %353 = vmatmul.mubr.f32.gmra.mrb[0].mxu0 %v271
  %v354 = vpop.f32.mrb[0].mxu0
  %v355 = vadd.f32 %v258, %v354
  %v356 = vpop.f32.mrb[0].mxu0
  %357 = vdwg.mxu0
  %v358 = vmul.f32 %v340, 0.01
  %v359 = vmul.f32 %v345, 0.01
  %v360 = vmul.f32 %v350, 0.01
  %v361 = vmul.f32 %v355, 0.01
  %v362 = vmax.f32 %v340, %v358
  %v363 = vmax.f32 %v345, %v359
  %v364 = vmax.f32 %v350, %v360
  %v365 = vmax.f32 %v355, %v361
  %v366 = vld [vmem:[%s5] sm:$0xff]
  %v367 = vld [vmem:[%s5 + $0x8] sm:$0xff]
  %v368 = vld [vmem:[%s5 + $0x10] sm:$0xff]
  %v369 = vld [vmem:[%s5 + $0x18] sm:$0xff]
  %v370 = vld [vmem:[%s6] sm:$0x1]
  %v372 = vlaneseq
  %v373 = vshrl.u32 %v372, 7
  %v374 = vsub.s32 0, %v373
  %v375 = vrot.slane %v370, %v374
  %377 = vxpose.xlu0.b32.start [1/16] %v362, 128
  %378 = vxpose.xlu0.b32.cont [2/16] %v363, 128
  %379 = vxpose.xlu0.b32.cont [3/16] %v364, 128
  %380 = vxpose.xlu0.b32.cont [4/16] %v365, 128
  %381 = vxpose.xlu0.b32.cont [5/16] 0.0, 128
  %382 = vxpose.xlu0.b32.cont [6/16] 0.0, 128
  %383 = vxpose.xlu0.b32.cont [7/16] 0.0, 128
  %384 = vxpose.xlu0.b32.cont [8/16] 0.0, 128
  %385 = vxpose.xlu0.b32.cont [9/16] 0.0, 128
  %386 = vxpose.xlu0.b32.cont [10/16] 0.0, 128
  %387 = vxpose.xlu0.b32.cont [11/16] 0.0, 128
  %388 = vxpose.xlu0.b32.cont [12/16] 0.0, 128
  %389 = vxpose.xlu0.b32.cont [13/16] 0.0, 128
  %390 = vxpose.xlu0.b32.cont [14/16] 0.0, 128
  %391 = vxpose.xlu0.b32.cont [15/16] 0.0, 128
  %392 = vxpose.xlu0.b32.end [16/16] 0.0, 128
  %v393 = vpop.trf.xlu0
  %v394 = vpop.trf.xlu0
  %v395 = vpop.trf.xlu0
  %v396 = vpop.trf.xlu0
  %v397 = vpop.trf.xlu0
  %v398 = vpop.trf.xlu0
  %v399 = vpop.trf.xlu0
  %v400 = vpop.trf.xlu0
  %v401 = vpop.trf.xlu0
  %v402 = vpop.trf.xlu0
  %v403 = vpop.trf.xlu0
  %v404 = vpop.trf.xlu0
  %v405 = vpop.trf.xlu0
  %v406 = vpop.trf.xlu0
  %v407 = vpop.trf.xlu0
  %v408 = vpop.trf.xlu0
  %vm409 = vcmask 261120
  %v411 = vsel %vm409, %v393, 0
  %413 = vmatprep.subr.mxu0 0.0
  %414 = vmatpush1.msra.mxu0 %v366
  %415 = vmatprep.subr.mxu0 0.0
  %416 = vmatpush1.msra.mxu0 %v367
  %417 = vmatprep.subr.mxu0 0.0
  %418 = vmatpush1.msra.mxu0 %v368
  %419 = vmatprep.subr.mxu0 0.0
  %420 = vmatpush1.msra.mxu0 %v369
  %421 = vmatprep.subr.mxu0 0.0
  %422 = vmatpush1.msra.mxu0 0.0
  %423 = vmatprep.subr.mxu0 0.0
  %424 = vmatpush1.msra.mxu0 0.0
  %425 = vmatprep.subr.mxu0 0.0
  %426 = vmatpush1.msra.mxu0 0.0
  %427 = vmatprep.subr.mxu0 0.0
  %428 = vmatpush1.msra.mxu0 0.0
  %429 = vmatprep.subr.mxu0 0.0
  %430 = vmatpush1.msra.mxu0 0.0
  %431 = vmatprep.subr.mxu0 0.0
  %432 = vmatpush1.msra.mxu0 0.0
  %433 = vmatprep.subr.mxu0 0.0
  %434 = vmatpush1.msra.mxu0 0.0
  %435 = vmatprep.subr.mxu0 0.0
  %436 = vmatpush1.msra.mxu0 0.0
  %437 = vmatprep.subr.mxu0 0.0
  %438 = vmatpush1.msra.mxu0 0.0
  %439 = vmatprep.subr.mxu0 0.0
  %440 = vmatpush1.msra.mxu0 0.0
  %441 = vmatprep.subr.mxu0 0.0
  %442 = vmatpush1.msra.mxu0 0.0
  %443 = vmatprep.subr.mxu0 0.0
  %444 = vmatpush1.msra.mxu0 0.0
  %445 = vmatprep.subr.mxu0 0.0
  %446 = vmatpush1.msra.mxu0 0.0
  %447 = vmatprep.subr.mxu0 0.0
  %448 = vmatpush1.msra.mxu0 0.0
  %449 = vmatprep.subr.mxu0 0.0
  %450 = vmatpush1.msra.mxu0 0.0
  %451 = vmatprep.subr.mxu0 0.0
  %452 = vmatpush1.msra.mxu0 0.0
  %453 = vmatprep.subr.mxu0 0.0
  %454 = vmatpush1.msra.mxu0 0.0
  %455 = vmatprep.subr.mxu0 0.0
  %456 = vmatpush1.msra.mxu0 0.0
  %457 = vmatprep.subr.mxu0 0.0
  %458 = vmatpush1.msra.mxu0 0.0
  %459 = vmatprep.subr.mxu0 0.0
  %460 = vmatpush1.msra.mxu0 0.0
  %461 = vmatprep.subr.mxu0 0.0
  %462 = vmatpush1.msra.mxu0 0.0
  %463 = vmatprep.subr.mxu0 0.0
  %464 = vmatpush1.msra.mxu0 0.0
  %465 = vmatprep.subr.mxu0 0.0
  %466 = vmatpush1.msra.mxu0 0.0
  %467 = vmatprep.subr.mxu0 0.0
  %468 = vmatpush1.msra.mxu0 0.0
  %469 = vmatprep.subr.mxu0 0.0
  %470 = vmatpush1.msra.mxu0 0.0
  %471 = vmatprep.subr.mxu0 0.0
  %472 = vmatpush1.msra.mxu0 0.0
  %473 = vmatprep.subr.mxu0 0.0
  %474 = vmatpush1.msra.mxu0 0.0
  %475 = vmatprep.subr.mxu0 0.0
  %476 = vmatpush1.msra.mxu0 0.0
  %477 = vmatprep.mubr.f32.mxu0 0.0
  %478 = vmatmul.mubr.f32.gmra.mrb[0].mxu0 %v411
  %v479 = vpop.f32.mrb[0].mxu0
  %v480 = vadd.f32 %v375, %v479
  %v481 = vpop.f32.mrb[0].mxu0
  %482 = vdwg.mxu0
  %vm483 = vcmask 31744
  %484 = vst.msk [vmem:[%s7] sm:$0xff] %vm483, %v480
  // Predicated region
  $region30: #{tpu_custom_call.1} parent=0 // pred_check
    _
  $region31: #{tpu_custom_call.1} parent=0 // pred_check_branch
    %486 = sbr.rel (0) target = $region33
  $region32: #{tpu_custom_call.1} parent=0 // pred_region
    _
  $region33: #{tpu_custom_call.1} parent=0 // pred_fallthru
    _
  // Predicated region
  $region34: #{tpu_custom_call.1} parent=0 // pred_check
    _
  $region35: #{tpu_custom_call.1} parent=0 // pred_check_branch
    %488 = sbr.rel (0) target = $region37
  $region36: #{tpu_custom_call.1} parent=0 // pred_region
    _
  $region37: #{tpu_custom_call.1} parent=0 // pred_fallthru
    _

</llo_original>
